<compile_context>
chip_gen: v5e
topology: v5e:2x2
jax: 0.10.0
libtpu: 0.0.40
codegen_flags: <defaults>
</compile_context>

<pallas_src>
import math
from functools import partial

import jax
import jax.numpy as jnp
from jax.experimental import pallas as pl
from jax.experimental.pallas import tpu as pltpu


def _round_up(x, m):
    return ((x + m - 1) // m) * m


def _embed_kernel(x_ref, w_ref, b_ref, o_ref):
    # x: (tm, K_pad) bf16, w: (K_pad, N_pad) bf16 (VMEM-resident),
    # b: (1, N_pad) f32.  Accumulate in f32 on the MXU, add bias in f32,
    # cast to the (bf16) output dtype only on the store.
    acc = jnp.dot(x_ref[...], w_ref[...], preferred_element_type=jnp.float32)
    o_ref[...] = (acc + b_ref[...]).astype(o_ref.dtype)


def patch_embed_linear(x2d, w, b, *, out_dtype=jnp.bfloat16, tm_max=512):
    """y = x2d @ w + b on the MXU, tiled over M only (w/b grid-invariant)."""
    M, K = x2d.shape
    K2, N = w.shape
    assert K == K2
    assert b.shape == (1, N)

    # Lane-align the reduction (K) and output (N) dims.
    K_pad = _round_up(K, 128)
    N_pad = _round_up(N, 128)

    # Tile M: multiple of 8, biased large, but keep >= 2 grid programs so the
    # "parallel" axis can be sharded across both v7x TensorCores.
    M8 = _round_up(max(M, 8), 8)
    if M8 > tm_max:
        tm = tm_max
    else:
        tm = max(8, _round_up(pl.cdiv(M8, 2), 8))
    M_pad = _round_up(M8, tm)

    if (M_pad, K_pad) != (M, K):
        x2d = jnp.pad(x2d, ((0, M_pad - M), (0, K_pad - K)))
    if (K_pad, N_pad) != (K, N):
        w = jnp.pad(w, ((0, K_pad - K), (0, N_pad - N)))
        b = jnp.pad(b, ((0, 0), (0, N_pad - N)))

    # VMEM budget (worst patch-embed case, tm=512, K=3072, N=1024, bf16):
    # x tile 3 MiB + weight 6 MiB + out tile 1 MiB (x2 buffering) << 32 MiB
    # scoped default, also fine on v7x's 64 MiB part.
    grid = (M_pad // tm,)

    y = pl.pallas_call(
        _embed_kernel,
        out_shape=jax.ShapeDtypeStruct((M_pad, N_pad), out_dtype),
        grid=grid,
        in_specs=[
            pl.BlockSpec((tm, K_pad), lambda i: (i, 0)),     # activations: per-M tile
            pl.BlockSpec((K_pad, N_pad), lambda i: (0, 0)),  # weight: resident
            pl.BlockSpec((1, N_pad), lambda i: (0, 0)),      # bias: resident, f32
        ],
        out_specs=pl.BlockSpec((tm, N_pad), lambda i: (i, 0)),
        compiler_params=pltpu.CompilerParams(
            dimension_semantics=("parallel",),
        ),
    )(x2d, w, b)

    if (M_pad, N_pad) != (M, N):
        y = y[:M, :N]
    return y


def _im2col(x, image_size, patch_size):
    """(B, C, H*W) -> (B*L, C*P*P), matching nn.Unfold's (c, ph, pw) order."""
    B, C, _ = x.shape
    H = W = image_size
    P = patch_size
    G = H // P
    out = x.reshape(B, C, G, P, G, P)
    out = out.transpose(0, 2, 4, 1, 3, 5)          # (B, Gh, Gw, C, Ph, Pw)
    return out.reshape(B * G * G, C * P * P)


def _forward(x, w, b, *, image_size, patch_size, vit_dim, compute_dtype, out_dtype):
    B = x.shape[0]
    # Unflatten + Unfold(stride==kernel) + permute == pure rearrangement.
    # Cast BEFORE the rearrangement so the materialized intermediate is bf16.
    patches = _im2col(x.astype(compute_dtype), image_size, patch_size)
    y = patch_embed_linear(patches, w, b, out_dtype=out_dtype)
    L = (image_size // patch_size) ** 2
    return y.reshape(B, L, vit_dim)


class TraditionalPatchEmbeddingPallas:
    """JAX/Pallas port of TraditionalPatchEmbedding."""

    def __init__(self, image_size, patch_size, vit_dim, channels=1, *, key,
                 compute_dtype=jnp.bfloat16, out_dtype=jnp.bfloat16):
        assert image_size % patch_size == 0
        self.image_size = image_size
        self.patch_size = patch_size
        self.vit_dim = vit_dim
        self.channels = channels
        self.compute_dtype = compute_dtype
        self.out_dtype = out_dtype

        in_features = patch_size * patch_size * channels
        k1, k2 = jax.random.split(key)
        bound = 1.0 / math.sqrt(in_features)
        # PyTorch Linear stores (out, in); keep (in, out) so the kernel does x @ w.
        self.w_f32 = jax.random.uniform(k1, (in_features, vit_dim),
                                        jnp.float32, -bound, bound)
        self.b_f32 = jax.random.uniform(k2, (1, vit_dim),
                                        jnp.float32, -bound, bound)
        # One-time cast of the weight to the MXU compute dtype (no per-call
        # astype / extra HBM round-trip). Bias stays f32 (tiny; added in f32
        # inside the kernel).
        self.w = self.w_f32.astype(compute_dtype)
        self.b = self.b_f32

        self._forward = jax.jit(partial(
            _forward,
            image_size=image_size, patch_size=patch_size, vit_dim=vit_dim,
            compute_dtype=compute_dtype, out_dtype=out_dtype))

    def __call__(self, x):
        assert x.ndim == 3, "Input must have three dimensions"
        return self._forward(x, self.w, self.b)


if __name__ == "__main__":
    key = jax.random.PRNGKey(0)
    k_param, k_x = jax.random.split(key)

    # Small shapes consistent with the module.
    B = 2
    channels = 1
    image_size = 32
    patch_size = 8           # K = C*P*P = 64 (padded to 128 inside the wrapper)
    vit_dim = 256            # lane-dense (multiple of 128) output

    emb = TraditionalPatchEmbeddingPallas(image_size, patch_size, vit_dim,
                                          channels=channels, key=k_param)

    x = jax.random.normal(k_x, (B, channels, image_size * image_size),
                          dtype=jnp.float32)

    out = jax.block_until_ready(emb(x))
    L = (image_size // patch_size) ** 2
    assert out.shape == (B, L, vit_dim)
    assert out.dtype == jnp.bfloat16

    out_f32 = out.astype(jnp.float32)

    # Pure-JAX reference of the same compute path (bf16 MXU, f32 accumulate).
    patches_ref = _im2col(x, image_size, patch_size)
    ref_bf16 = (jnp.dot(patches_ref.astype(jnp.bfloat16),
                        emb.w,
                        preferred_element_type=jnp.float32)
                + emb.b_f32).reshape(B, L, vit_dim)
    # Kernel output is this value rounded to bf16 on store.
    assert jnp.allclose(out_f32, ref_bf16, atol=2e-2, rtol=2e-2)

    # Sanity check against the full-f32 module semantics (loose tol: bf16 MXU
    # compute + bf16 output store).
    ref_f32 = (patches_ref @ emb.w_f32 + emb.b_f32).reshape(B, L, vit_dim)
    assert jnp.allclose(out_f32, ref_f32, atol=5e-2, rtol=5e-2)

    print("KERNEL_OK")
</pallas_src>

<mosaic_0001>
module attributes {stable_mosaic.version = 11 : i64} {
  func.func @_embed_kernel(%arg0: i32, %arg1: memref<16x128xbf16, #tpu.memory_space<vmem>>, %arg2: memref<128x256xbf16, #tpu.memory_space<vmem>>, %arg3: memref<1x256xf32, #tpu.memory_space<vmem>>, %arg4: memref<16x256xbf16, #tpu.memory_space<vmem>>) attributes {dimension_semantics = [#tpu.dimension_semantics<parallel>], iteration_bounds = array<i64: 2>, scalar_prefetch = 0 : i64, scratch_operands = 0 : i64, tpu.core_type = #tpu.core_type<tc>, window_params = [{transform_indices = @transform_0, window_bounds = array<i64: 16, 128>}, {pipeline_mode = #tpu.pipeline_mode<synchronous>, transform_indices = @transform_1, window_bounds = array<i64: 128, 256>}, {pipeline_mode = #tpu.pipeline_mode<synchronous>, transform_indices = @transform_2, window_bounds = array<i64: 1, 256>}, {transform_indices = @transform_3, window_bounds = array<i64: 16, 256>}]} {
    %c0 = arith.constant 0 : index
    %c0_0 = arith.constant 0 : index
    %0 = vector.load %arg1[%c0, %c0_0] : memref<16x128xbf16, #tpu.memory_space<vmem>>, vector<16x128xbf16>
    %c0_1 = arith.constant 0 : index
    %c0_2 = arith.constant 0 : index
    %1 = vector.load %arg2[%c0_1, %c0_2] : memref<128x256xbf16, #tpu.memory_space<vmem>>, vector<128x256xbf16>
    %cst = arith.constant dense<0.000000e+00> : vector<16x256xf32>
    %2 = tpu.matmul %0, %1, %cst {dimension_numbers = #tpu.dot_dimension_numbers<[1], [0], [0], [1], [0, 0, 1, 1], [], []>} : vector<16x128xbf16>, vector<128x256xbf16>, vector<16x256xf32> -> vector<16x256xf32>
    %c0_3 = arith.constant 0 : index
    %c0_4 = arith.constant 0 : index
    %3 = vector.load %arg3[%c0_3, %c0_4] : memref<1x256xf32, #tpu.memory_space<vmem>>, vector<1x256xf32>
    %4 = vector.broadcast %3 : vector<1x256xf32> to vector<16x256xf32>
    %5 = arith.addf %2, %4 : vector<16x256xf32>
    %6 = arith.truncf %5 : vector<16x256xf32> to vector<16x256xbf16>
    %c0_5 = arith.constant 0 : index
    %c0_6 = arith.constant 0 : index
    %7 = vector.load %arg4[%c0_5, %c0_6] : memref<16x256xbf16, #tpu.memory_space<vmem>>, vector<16x256xbf16>
    tpu.vector_store %arg4[%c0_5, %c0_6], %6 {strides = array<i32>} : memref<16x256xbf16, #tpu.memory_space<vmem>>, vector<16x256xbf16>,
    return
  }
  func.func @transform_0(%arg0: i32) -> (i32, i32) {
    %c0_i32 = arith.constant 0 : i32
    %c0_i32_0 = arith.constant 0 : i32
    return %arg0, %c0_i32 : i32, i32
  }
  func.func @transform_1(%arg0: i32) -> (i32, i32) {
    %c0_i32 = arith.constant 0 : i32
    %c0_i32_0 = arith.constant 0 : i32
    %c0_i32_1 = arith.constant 0 : i32
    return %c0_i32, %c0_i32_0 : i32, i32
  }
  func.func @transform_2(%arg0: i32) -> (i32, i32) {
    %c0_i32 = arith.constant 0 : i32
    %c0_i32_0 = arith.constant 0 : i32
    %c0_i32_1 = arith.constant 0 : i32
    return %c0_i32, %c0_i32_0 : i32, i32
  }
  func.func @transform_3(%arg0: i32) -> (i32, i32) {
    %c0_i32 = arith.constant 0 : i32
    %c0_i32_0 = arith.constant 0 : i32
    return %arg0, %c0_i32 : i32, i32
  }
}

</mosaic_0001>

<llo_original>
// kernel: _forward.1
$region0: #{_forward.1}
  #allocation0 [shape = 'u32[]', space=smem, size = 0x4, offset = 0x4, fixed_abs, tag = 'smem constant byte address 0x4 - core index']
  #allocation1 [shape = 'u32[72,128]{1,0:T(1,128)}', space=vmem, size = 0x9000, scoped, tag = 'internal scratch']
  %s0 = inlined_call_operand.vmem [shape: bf16[32,128], index: 0, kind: input, shape index: {}]
  %s1 = inlined_call_operand.vmem [shape: bf16[128,256], index: 1, kind: input, shape index: {}]
  %s2 = inlined_call_operand.vmem [shape: f32[1,256], index: 2, kind: input, shape index: {}]
  %s3 = inlined_call_operand.hbm [shape: bf16[32,256], index: 3, kind: output, shape index: {}]
  %s4 = sld [smem:[#allocation0]]
  $region45: #{_forward.1} parent=0
    _
  %s6 = ssub.s32 1, %s4
  %s7 = scalar_select 0, %s6, %s4
  $region1: #{_forward.1} parent=0
    #allocation2 [shape = 'u8[16384]{0}', space=vmem, size = 0x4000, scoped, tag = 'output window, operand 0']
    #allocation3 [shape = 's32[2]{0}', space=sflag, size = 0x8, scoped, tag = 'scoped memory for _forward.1']
    %8 = vsyncpa [#allocation3], 0
    %s9 = scalar_lea.sflag [#allocation3], 1
    %10 = vsyncpa %s9, 0
    loop: start=0, step=1, limit=4
    $region2: #{_forward.1} parent=1 // loop_pre_header
      _
    $region3: #{_forward.1} parent=1 // loop_header
      %s12 = sphi 0, %s16
      %p13 = scmp.ge.s32.totalorder %s12, 4
      %s22 = sphi 0, %s24
      %s25 = sphi 0, %s22
      %s26 = sphi 0, %s25
      %s42 = sphi 0, %s26
      %s46 = sphi 0, %s46
      %s48 = sphi 0, %s46
      %s49 = sphi 0, %s48
      %s63 = sphi 0, %s49
      %s67 = sphi 0, %s67
      %s69 = sphi 0, %s67
      %s70 = sphi 0, %s69
      %s84 = sphi 0, %s70
      %s90 = sphi 0, %s92
      %s93 = sphi 0, %s90
      %s94 = sphi 0, %s93
      %s110 = sphi 0, %s94
    $region4: #{_forward.1} parent=1 // loop_header_branch
      %15 = sbr.rel (%p13) target = $region8
    $region5: #{_forward.1} parent=1 // loop_body
      %s17 = ssub.s32 %s12, 1
      %s18 = ssub.s32 %s12, 2
      %s19 = sadd.s32 %s12, 1
      %s20 = ssub.s32 %s12, %s19
      %p21 = scmp.eq.s32.totalorder %s20, 0
      %s23 = sadd.s32 %s22, 1
      %s24 = scalar_select %p21, %s22, %s23
      %p27 = pneg %p21
      %p28 = scmp.eq.s32.totalorder %s12, 1
      %p29 = por %p27, %p28
      %p30 = scmp.ne.s32.totalorder %s22, %s25
      %p31 = scmp.eq.s32.totalorder %s12, 0
      %p32 = por %p30, %p31
      %p33 = scmp.ne.s32.totalorder %s22, %s25
      %p34 = scmp.eq.s32.totalorder %s17, 1
      %p35 = por %p33, %p34
      %p36 = scmp.ne.s32.totalorder %s25, %s26
      %p37 = scmp.eq.s32.totalorder %s17, 0
      %p38 = por %p36, %p37
      %p39 = scmp.ne.s32.totalorder %s25, %s26
      %p40 = scmp.eq.s32.totalorder %s18, 1
      %p41 = por %p39, %p40
      %p43 = scmp.ne.s32.totalorder %s26, %s42
      %p44 = scmp.eq.s32.totalorder %s18, 0
      %p45 = por %p43, %p44
      %s47 = sadd.s32 %s46, 1
      %p50 = scmp.eq.s32.totalorder %s12, 1
      %p51 = scmp.ne.s32.totalorder %s46, %s48
      %p52 = scmp.eq.s32.totalorder %s12, 0
      %p53 = por %p51, %p52
      %p54 = scmp.ne.s32.totalorder %s46, %s48
      %p55 = scmp.eq.s32.totalorder %s17, 1
      %p56 = por %p54, %p55
      %p57 = scmp.ne.s32.totalorder %s48, %s49
      %p58 = scmp.eq.s32.totalorder %s17, 0
      %p59 = por %p57, %p58
      %p60 = scmp.ne.s32.totalorder %s48, %s49
      %p61 = scmp.eq.s32.totalorder %s18, 1
      %p62 = por %p60, %p61
      %p64 = scmp.ne.s32.totalorder %s49, %s63
      %p65 = scmp.eq.s32.totalorder %s18, 0
      %p66 = por %p64, %p65
      %s68 = sadd.s32 %s67, 1
      %p71 = scmp.eq.s32.totalorder %s12, 1
      %p72 = scmp.ne.s32.totalorder %s67, %s69
      %p73 = scmp.eq.s32.totalorder %s12, 0
      %p74 = por %p72, %p73
      %p75 = scmp.ne.s32.totalorder %s67, %s69
      %p76 = scmp.eq.s32.totalorder %s17, 1
      %p77 = por %p75, %p76
      %p78 = scmp.ne.s32.totalorder %s69, %s70
      %p79 = scmp.eq.s32.totalorder %s17, 0
      %p80 = por %p78, %p79
      %p81 = scmp.ne.s32.totalorder %s69, %s70
      %p82 = scmp.eq.s32.totalorder %s18, 1
      %p83 = por %p81, %p82
      %p85 = scmp.ne.s32.totalorder %s70, %s84
      %p86 = scmp.eq.s32.totalorder %s18, 0
      %p87 = por %p85, %p86
      %s88 = ssub.s32 %s12, %s19
      %p89 = scmp.eq.s32.totalorder %s88, 0
      %s91 = sadd.s32 %s90, 1
      %s92 = scalar_select %p89, %s90, %s91
      %p95 = pneg %p89
      %p96 = scmp.eq.s32.totalorder %s12, 1
      %p97 = por %p95, %p96
      %p98 = scmp.ne.s32.totalorder %s90, %s93
      %p99 = scmp.eq.s32.totalorder %s12, 0
      %p100 = por %p98, %p99
      %p101 = scmp.ne.s32.totalorder %s90, %s93
      %p102 = scmp.eq.s32.totalorder %s17, 1
      %p103 = por %p101, %p102
      %p104 = scmp.ne.s32.totalorder %s93, %s94
      %p105 = scmp.eq.s32.totalorder %s17, 0
      %p106 = por %p104, %p105
      %p107 = scmp.ne.s32.totalorder %s93, %s94
      %p108 = scmp.eq.s32.totalorder %s18, 1
      %p109 = por %p107, %p108
      %p111 = scmp.ne.s32.totalorder %s94, %s110
      %p112 = scmp.eq.s32.totalorder %s18, 0
      %p113 = por %p111, %p112
      %p114 = scmp.le.s32.totalorder 1, %s12
      %p115 = scmp.lt.s32.totalorder %s12, 3
      %p116 = pnand %p114, %p115
      %p117 = pneg %p116
      // Predicated region
      $region9: #{_forward.1} parent=5 // pred_check
        _
      $region10: #{_forward.1} parent=5 // pred_check_branch
        %119 = sbr.rel (%p116) target = $region12
      $region11: #{_forward.1} parent=5 // pred_region
        %s120 = ssub.s32 %s12, 1
        // Predicated region
        $region13: #{_forward.1} parent=11 // pred_check
          %p121 = pneg %p59
        $region14: #{_forward.1} parent=11 // pred_check_branch
          %123 = sbr.rel (%p121) target = $region16
        $region15: #{_forward.1} parent=11 // pred_region
          _
        $region16: #{_forward.1} parent=11 // pred_fallthru
          _
        // Predicated region
        $region17: #{_forward.1} parent=11 // pred_check
          %p124 = pneg %p80
        $region18: #{_forward.1} parent=11 // pred_check_branch
          %126 = sbr.rel (%p124) target = $region20
        $region19: #{_forward.1} parent=11 // pred_region
          _
        $region20: #{_forward.1} parent=11 // pred_fallthru
          _
      $region12: #{_forward.1} parent=5 // pred_fallthru
        _
      %p127 = scmp.lt.s32.totalorder %s12, 2
      // Predicated region
      $region21: #{_forward.1} parent=5 // pred_check
        %p128 = pneg %p127
      $region22: #{_forward.1} parent=5 // pred_check_branch
        %130 = sbr.rel (%p128) target = $region24
      $region23: #{_forward.1} parent=5 // pred_region
        // Predicated region
        $region25: #{_forward.1} parent=23 // pred_check
          %p131 = pneg %p32
        $region26: #{_forward.1} parent=23 // pred_check_branch
          %133 = sbr.rel (%p131) target = $region28
        $region27: #{_forward.1} parent=23 // pred_region
          %s134 = smul.u32 2, %s12
          %p135 = scmp.lt.s32.totalorder %s134, 3
          %s136 = scalar_select %p135, %s134, 3
          %s137 = smul.addr %s136, 4
          %s138 = scalar_lea.vmem %s0, %s137
          %s139 = smul.u32 2, %s12
        $region28: #{_forward.1} parent=23 // pred_fallthru
          _
      $region24: #{_forward.1} parent=5 // pred_fallthru
        _
      %p140 = scmp.le.s32.totalorder 1, %s12
      %p141 = scmp.lt.s32.totalorder %s12, 3
      %p142 = pnand %p140, %p141
      %p143 = pneg %p142
      // Predicated region
      $region29: #{_forward.1} parent=5 // pred_check
        _
      $region30: #{_forward.1} parent=5 // pred_check_branch
        %145 = sbr.rel (%p142) target = $region32
      $region31: #{_forward.1} parent=5 // pred_region
        %s146 = ssub.s32 %s12, 1
        %s147 = smul.u32 2, %s17
        %p148 = scmp.lt.s32.totalorder %s147, 3
        %s149 = scalar_select %p148, %s147, 3
        %s150 = smul.addr %s149, 4
        %s151 = scalar_lea.vmem %s0, %s150
        %p152 = pneg %p38
        %p153 = pneg %p35
        %p154 = pneg %p59
        %p155 = pneg %p56
        %p156 = pneg %p80
        %p157 = pneg %p77
        %p158 = pneg %p106
        %p159 = pneg %p103
        %s160 = sand.u32 %s93, 1
        %s161 = scalar_lea.sflag [#allocation3], %s160
        %s162 = sand.u32 %s93, 1
        %s163 = smul.addr %s162, 16
        %s164 = scalar_lea.vmem [#allocation2], %s163
        %s165 = smul.u32 2, %s17
        %p166 = scmp.lt.s32.totalorder %s165, 3
        %s167 = scalar_select %p166, %s165, 3
        %s168 = smul.addr %s167, 4
        %s169 = scalar_lea.vmem %s0, %s168
        %s170 = smul.u32 2, %s17
        %s171 = smul.u32 2, %s17
        %v172 = vld [vmem:[%s169] sm:$0xf]
        %v173 = vld [vmem:[%s169 + $0x4] sm:$0xf]
        %v174 = vld [vmem:[%s1] sm:$0xff]
        %v175 = vld [vmem:[%s1 + $0x8] sm:$0xff]
        %v176 = vld [vmem:[%s1 + $0x10] sm:$0xff]
        %v177 = vld [vmem:[%s1 + $0x18] sm:$0xff]
        %v178 = vld [vmem:[%s1 + $0x20] sm:$0xff]
        %v179 = vld [vmem:[%s1 + $0x28] sm:$0xff]
        %v180 = vld [vmem:[%s1 + $0x30] sm:$0xff]
        %v181 = vld [vmem:[%s1 + $0x38] sm:$0xff]
        %v182 = vld [vmem:[%s1 + $0x40] sm:$0xff]
        %v183 = vld [vmem:[%s1 + $0x48] sm:$0xff]
        %v184 = vld [vmem:[%s1 + $0x50] sm:$0xff]
        %v185 = vld [vmem:[%s1 + $0x58] sm:$0xff]
        %v186 = vld [vmem:[%s1 + $0x60] sm:$0xff]
        %v187 = vld [vmem:[%s1 + $0x68] sm:$0xff]
        %v188 = vld [vmem:[%s1 + $0x70] sm:$0xff]
        %v189 = vld [vmem:[%s1 + $0x78] sm:$0xff]
        %v190 = vld [vmem:[%s2] sm:$0x3]
        %v192 = vperm.slane %v190, 0
        %v193 = vperm.slane %v190, 1
        %v198 = vunpack.c.l.b16 %v172
        %v199 = vunpack.c.l.b16 %v173
        %v200 = vpack.c.b16 %v199, %v198
        %v218 = vunpack.c.l.b16 %v174
        %v219 = vunpack.c.h.b16 %v174
        %v220 = vunpack.c.l.b16 %v175
        %v221 = vunpack.c.h.b16 %v175
        %v222 = vunpack.c.l.b16 %v176
        %v223 = vunpack.c.h.b16 %v176
        %v224 = vunpack.c.l.b16 %v177
        %v225 = vunpack.c.h.b16 %v177
        %v226 = vunpack.c.l.b16 %v178
        %v227 = vunpack.c.h.b16 %v178
        %v228 = vunpack.c.l.b16 %v179
        %v229 = vunpack.c.h.b16 %v179
        %v230 = vunpack.c.l.b16 %v180
        %v231 = vunpack.c.h.b16 %v180
        %v232 = vunpack.c.l.b16 %v181
        %v233 = vunpack.c.h.b16 %v181
        %v234 = vunpack.c.l.b16 %v182
        %v235 = vunpack.c.h.b16 %v182
        %v236 = vunpack.c.l.b16 %v183
        %v237 = vunpack.c.h.b16 %v183
        %v238 = vunpack.c.l.b16 %v184
        %v239 = vunpack.c.h.b16 %v184
        %v240 = vunpack.c.l.b16 %v185
        %v241 = vunpack.c.h.b16 %v185
        %v242 = vunpack.c.l.b16 %v186
        %v243 = vunpack.c.h.b16 %v186
        %v244 = vunpack.c.l.b16 %v187
        %v245 = vunpack.c.h.b16 %v187
        %v246 = vunpack.c.l.b16 %v188
        %v247 = vunpack.c.h.b16 %v188
        %v248 = vunpack.c.l.b16 %v189
        %v249 = vunpack.c.h.b16 %v189
        %v250 = vpack.c.b16 %v220, %v218
        %v251 = vpack.c.b16 %v221, %v219
        %v252 = vpack.c.b16 %v224, %v222
        %v253 = vpack.c.b16 %v225, %v223
        %v254 = vpack.c.b16 %v228, %v226
        %v255 = vpack.c.b16 %v229, %v227
        %v256 = vpack.c.b16 %v232, %v230
        %v257 = vpack.c.b16 %v233, %v231
        %v258 = vpack.c.b16 %v236, %v234
        %v259 = vpack.c.b16 %v237, %v235
        %v260 = vpack.c.b16 %v240, %v238
        %v261 = vpack.c.b16 %v241, %v239
        %v262 = vpack.c.b16 %v244, %v242
        %v263 = vpack.c.b16 %v245, %v243
        %v264 = vpack.c.b16 %v248, %v246
        %v265 = vpack.c.b16 %v249, %v247
        %282 = vmatpush.bf16.msra.mxu0 %v264
        %283 = vmatpush.bf16.msra.mxu0 %v262
        %284 = vmatpush.bf16.msra.mxu0 %v260
        %285 = vmatpush.bf16.msra.mxu0 %v258
        %286 = vmatpush.bf16.msra.mxu0 %v256
        %287 = vmatpush.bf16.msra.mxu0 %v254
        %288 = vmatpush.bf16.msra.mxu0 %v252
        %289 = vmatpush.bf16.msra.mxu0 %v250
        %290 = vmatmul.bf16.gmra.mxu0 %v200
        %v291 = vpop.f32.mrf.mxu0
        %v292 = vadd.f32 %v192, %v291
        %v293 = vpop.f32.mrf.mxu0
        %v294 = vadd.f32 %v192, %v293
        %295 = vdwg.mxu0
        %296 = vmatpush.bf16.msra.mxu0 %v265
        %297 = vmatpush.bf16.msra.mxu0 %v263
        %298 = vmatpush.bf16.msra.mxu0 %v261
        %299 = vmatpush.bf16.msra.mxu0 %v259
        %300 = vmatpush.bf16.msra.mxu0 %v257
        %301 = vmatpush.bf16.msra.mxu0 %v255
        %302 = vmatpush.bf16.msra.mxu0 %v253
        %303 = vmatpush.bf16.msra.mxu0 %v251
        %304 = vmatmul.bf16.gmra.mxu0 %v200
        %v305 = vpop.f32.mrf.mxu0
        %v306 = vadd.f32 %v193, %v305
        %v307 = vpop.f32.mrf.mxu0
        %v308 = vadd.f32 %v193, %v307
        %309 = vdwg.mxu0
        %v310 = vpack.c.bf16 %v306, %v292
        %v311 = vpack.c.bf16 %v308, %v294
        %312 = vst [vmem:[%s164] sm:$0xff] %v310
        %313 = vst [vmem:[%s164 + $0x8] sm:$0xff] %v311
        %s314 = sand.u32 %s93, 1
        %s315 = scalar_lea.sflag [#allocation3], %s314
        %s316 = sand.u32 %s93, 1
        %s317 = smul.addr %s316, 16
        %s318 = scalar_lea.vmem [#allocation2], %s317
        // Predicated region
        $region33: #{_forward.1} parent=31 // pred_check
          %p319 = pneg %p103
        $region34: #{_forward.1} parent=31 // pred_check_branch
          %321 = sbr.rel (%p319) target = $region36
        $region35: #{_forward.1} parent=31 // pred_region
          %s322 = smul.u32 2, %s17
          %324 = vsyncadd %s315, 0
          %s325 = smul.addr %s322, 2
          %s326 = smul.addr %s325, 4
          %s327 = scalar_lea.hbm %s3, %s326
          %s328 = sshll.u32 %s318, 4
          %s329 = int_to_ptr.vmem [resolvable:$true] %s328
          %s330 = sshll.u32 %s327, 4
          %s331 = int_to_ptr.hbm [resolvable:$true] %s330
          %336 = dma.vmem_to_hbm [thread:$0]  %s329, 256, %s331, %s315, 128, 128, 8
        $region36: #{_forward.1} parent=31 // pred_fallthru
          _
      $region32: #{_forward.1} parent=5 // pred_fallthru
        _
      %p337 = scmp.le.s32.totalorder 2, %s12
      // Predicated region
      $region37: #{_forward.1} parent=5 // pred_check
        %p338 = pneg %p337
      $region38: #{_forward.1} parent=5 // pred_check_branch
        %340 = sbr.rel (%p338) target = $region40
      $region39: #{_forward.1} parent=5 // pred_region
        %s341 = ssub.s32 %s12, 2
        // Predicated region
        $region41: #{_forward.1} parent=39 // pred_check
          %p342 = pneg %p109
        $region42: #{_forward.1} parent=39 // pred_check_branch
          %344 = sbr.rel (%p342) target = $region44
        $region43: #{_forward.1} parent=39 // pred_region
          %s345 = sand.u32 %s94, 1
          %s346 = scalar_lea.sflag [#allocation3], %s345
          %s347 = sand.u32 %s94, 1
          %s348 = smul.addr %s347, 16
          %s349 = scalar_lea.vmem [#allocation2], %s348
          %351 = dma.done %s346, 256
        $region44: #{_forward.1} parent=39 // pred_fallthru
          _
      $region40: #{_forward.1} parent=5 // pred_fallthru
        _
    $region6: #{_forward.1} parent=1 // loop_footer
      %s16 = sadd.s32 1, %s12
    $region7: #{_forward.1} parent=1 // loop_footer_branch
      %11 = sbr.rel target = $region3
    $region8: #{_forward.1} parent=1 // loop_exit
      _
    %352 = vsyncpa [#allocation3], 1
    %s353 = scalar_lea.sflag [#allocation3], 1
    %354 = vsyncpa %s353, 1

</llo_original>
